<compile_context>
chip_gen: v6e
topology: v6e:2x2x1
jax: 0.10.0
libtpu: 0.0.40
codegen_flags: <defaults>
</compile_context>

<pallas_src>
import jax
import jax.numpy as jnp
from jax.experimental import pallas as pl
from jax.experimental.pallas import tpu as pltpu

BN_EPS = 1e-5


def make_kernel(n_cont, vocab_sizes, k_pad):
    """Kernel on the transposed problem: features on sublanes, batch on lanes."""
    n_cat = len(vocab_sizes)
    # Static row offset of each category's one-hot block inside the stacked
    # (K_pad, tb) first-layer activation: [cont(0:n_cont) | cat0 | cat1 | zero-pad].
    row_offs = []
    o = n_cont
    for v in vocab_sizes:
        row_offs.append(o)
        o += v

    def kernel(xcat_ref, xcont_ref, w1_ref, b1_ref, w2t_ref, b2_ref, o_ref, act_ref):
        # xcat_ref : (n_cat,  tb) int32   categorical ids, batch on lanes
        # xcont_ref: (n_cont, tb) f32     raw continuous features (bn_cont folded into w1)
        # w1_ref   : (h1, k_pad)  f32     merged folded first-layer weight^T
        # b1_ref   : (h1, 1)      f32
        # w2t_ref  : (h2, h1)     f32     BN(h1)-folded W2^T
        # b2_ref   : (h2, 1)      f32
        # o_ref    : (h2, tb)
        # act_ref  : (k_pad, tb)  f32     VMEM scratch for the stacked activation
        tb = act_ref.shape[1]
        idx = xcat_ref[...]                                        # (n_cat, tb)

        # One shared iota for every category's one-hot (hoisted out of the loop).
        iota = jax.lax.broadcasted_iota(jnp.int32, (k_pad, tb), 0)  # (k_pad, tb)
        hot = iota == (idx[0:1, :] + row_offs[0])
        for c in range(1, n_cat):
            hot = hot | (iota == (idx[c:c + 1, :] + row_offs[c]))
        # Full-tile store of the stacked one-hot (zero-pad rows stay 0), then
        # overwrite rows [0, n_cont) with the continuous features.
        act_ref[...] = hot.astype(jnp.float32)
        act_ref[0:n_cont, :] = xcont_ref[...]

        # Single merged first-layer matmul (embeddings + bn_cont + Linear1 folded).
        h = jnp.dot(w1_ref[...], act_ref[...],
                    preferred_element_type=jnp.float32)             # (h1, tb)
        h = jnp.maximum(h + b1_ref[...], 0.0)                       # Linear1 + ReLU
        y = jnp.dot(w2t_ref[...], h,
                    preferred_element_type=jnp.float32) + b2_ref[...]
        o_ref[...] = jnp.maximum(y, 0.0).astype(o_ref.dtype)        # BN-folded Linear2 + ReLU

    return kernel


def make_params(key, emb_szs, n_cont, layers):
    """Deterministic synthetic parameters matching the module's __init__ shapes."""
    ks = list(jax.random.split(key, 16))
    p = {}
    p["emb_tables"] = [
        jax.random.normal(ks.pop(), (ni, nf), jnp.float32) * 0.01 for ni, nf in emb_szs
    ]
    p["bn_cont_gamma"] = 1.0 + 0.1 * jax.random.normal(ks.pop(), (n_cont,), jnp.float32)
    p["bn_cont_beta"] = 0.1 * jax.random.normal(ks.pop(), (n_cont,), jnp.float32)
    p["bn_cont_mean"] = 0.1 * jax.random.normal(ks.pop(), (n_cont,), jnp.float32)
    p["bn_cont_var"] = jax.random.uniform(ks.pop(), (n_cont,), jnp.float32, 0.5, 1.5)
    n_emb = sum(nf for _, nf in emb_szs)
    d_in, h1, h2 = n_emb + n_cont, layers[0], layers[1]
    p["w1"] = jax.random.normal(ks.pop(), (d_in, h1), jnp.float32) / jnp.sqrt(d_in)
    p["b1"] = 0.01 * jax.random.normal(ks.pop(), (h1,), jnp.float32)
    p["bn1_gamma"] = 1.0 + 0.1 * jax.random.normal(ks.pop(), (h1,), jnp.float32)
    p["bn1_beta"] = 0.1 * jax.random.normal(ks.pop(), (h1,), jnp.float32)
    p["bn1_mean"] = 0.1 * jax.random.normal(ks.pop(), (h1,), jnp.float32)
    p["bn1_var"] = jax.random.uniform(ks.pop(), (h1,), jnp.float32, 0.5, 1.5)
    p["w2"] = jax.random.normal(ks.pop(), (h1, h2), jnp.float32) / jnp.sqrt(h1)
    p["b2"] = 0.01 * jax.random.normal(ks.pop(), (h2,), jnp.float32)
    return p


def tabular_forward_fm(x_cat_fm, x_cont_fm, params, *, block_b=512,
                       out_dtype=jnp.float32):
    """Feature-major entry point (preferred: no transpose/pad HBM passes).

    x_cat_fm : (n_cat, B) int32, x_cont_fm : (n_cont, B) f32  ->  (h2, B) out_dtype.
    block_b = 512-1024 amortizes per-grid-step overhead; it is capped so the
    'parallel' batch grid keeps >= 2 steps (both v7x TensorCores busy).
    Set out_dtype=jnp.bfloat16 to halve output HBM traffic (relax tolerances).
    """
    n_cat, B = x_cat_fm.shape
    n_cont = x_cont_fm.shape[0]
    tables = params["emb_tables"]
    vocabs = [t.shape[0] for t in tables]
    emb_dims = [t.shape[1] for t in tables]
    n_emb = sum(emb_dims)
    h1 = params["w1"].shape[1]
    h2 = params["w2"].shape[1]

    # ---- Fold eval-mode bn_cont + embedding tables + eval-mode BN(h1) into the
    #      two linear layers; build ONE merged first-layer weight (h1, k_pad). ----
    w1 = params["w1"]                                             # (n_emb + n_cont, h1)
    s_cont = params["bn_cont_gamma"] * jax.lax.rsqrt(params["bn_cont_var"] + BN_EPS)
    t_cont = params["bn_cont_beta"] - params["bn_cont_mean"] * s_cont

    k = n_cont + sum(vocabs)
    k_pad = ((k + 7) // 8) * 8
    w1m = jnp.zeros((h1, k_pad), jnp.float32)
    w1m = w1m.at[:, :n_cont].set((s_cont[:, None] * w1[n_emb:, :]).T)  # cont (bn-folded)
    col, off = n_cont, 0
    for t, d in zip(tables, emb_dims):
        w1m = w1m.at[:, col:col + t.shape[0]].set((t @ w1[off:off + d, :]).T)
        col += t.shape[0]
        off += d
    b1 = (params["b1"] + t_cont @ w1[n_emb:, :]).reshape(h1, 1)

    s1 = params["bn1_gamma"] * jax.lax.rsqrt(params["bn1_var"] + BN_EPS)
    t1 = params["bn1_beta"] - params["bn1_mean"] * s1
    w2t = (s1[:, None] * params["w2"]).T                          # (h2, h1)
    b2 = (params["b2"] + t1 @ params["w2"]).reshape(h2, 1)

    # ---- Batch tiling: lane-dense (batch on the 128-wide lane axis). ----
    block_b = max(128, (block_b // 128) * 128)
    if B > 128:
        # Keep >= 2 grid steps so v7x's two TensorCores both get work.
        block_b = min(block_b, (((B + 1) // 2) + 127) // 128 * 128)
    Bp = pl.cdiv(B, block_b) * block_b

    x_cat_fm = x_cat_fm.astype(jnp.int32)
    x_cont_fm = x_cont_fm.astype(jnp.float32)
    if Bp != B:   # only pad when the batch isn't already a tile multiple
        x_cat_fm = jnp.pad(x_cat_fm, ((0, 0), (0, Bp - B)))
        x_cont_fm = jnp.pad(x_cont_fm, ((0, 0), (0, Bp - B)))

    grid = (Bp // block_b,)
    batch_spec = lambda rows: pl.BlockSpec((rows, block_b), lambda i: (0, i))
    full_spec = lambda shape: pl.BlockSpec(shape, lambda i: (0, 0))

    out_bytes = jnp.dtype(out_dtype).itemsize
    cost = pl.CostEstimate(
        flops=2 * Bp * (h1 * k_pad + h2 * h1),
        transcendentals=0,
        bytes_accessed=Bp * (n_cat * 4 + n_cont * 4 + h2 * out_bytes)
                       + 4 * (h1 * k_pad + h1 + h2 * h1 + h2),
    )

    out_fm = pl.pallas_call(
        make_kernel(n_cont, vocabs, k_pad),
        out_shape=jax.ShapeDtypeStruct((h2, Bp), out_dtype),
        grid_spec=pltpu.PrefetchScalarGridSpec(
            num_scalar_prefetch=0,
            grid=grid,
            in_specs=[batch_spec(n_cat), batch_spec(n_cont),
                      full_spec((h1, k_pad)), full_spec((h1, 1)),
                      full_spec((h2, h1)), full_spec((h2, 1))],
            out_specs=pl.BlockSpec((h2, block_b), lambda i: (0, i)),
            scratch_shapes=[pltpu.VMEM((k_pad, block_b), jnp.float32)],
        ),
        compiler_params=pltpu.CompilerParams(
            dimension_semantics=("parallel",),
            vmem_limit_bytes=32 * 1024 * 1024,   # explicit (v5e default is 16 MiB)
        ),
        cost_estimate=cost,
    )(x_cat_fm, x_cont_fm, w1m, b1, w2t, b2)

    if Bp != B:
        out_fm = out_fm[:, :B]
    return out_fm                                                  # (h2, B)


def tabular_forward(x_cat, x_cont, params, *, block_b=512, out_dtype=jnp.float32):
    """Batch-major (PyTorch-layout) convenience wrapper: (B, n_cat),(B, n_cont) -> (B, h2).

    NOTE: the transposes here are extra XLA HBM passes; prefer tabular_forward_fm
    with feature-major arrays at the model boundary.
    """
    out_fm = tabular_forward_fm(x_cat.T, x_cont.T, params,
                                block_b=block_b, out_dtype=out_dtype)
    return out_fm.T


def tabular_forward_ref(x_cat, x_cont, params):
    """Pure-JAX reference (mirrors the PyTorch forward, eval mode)."""
    embs = [params["emb_tables"][i][x_cat[:, i]] for i in range(len(params["emb_tables"]))]
    x_emb = jnp.concatenate(embs, axis=1)
    xc = (x_cont - params["bn_cont_mean"]) / jnp.sqrt(params["bn_cont_var"] + BN_EPS)
    xc = xc * params["bn_cont_gamma"] + params["bn_cont_beta"]
    x = jnp.concatenate([x_emb, xc], axis=1)
    x = jnp.maximum(x @ params["w1"] + params["b1"], 0.0)
    x = (x - params["bn1_mean"]) / jnp.sqrt(params["bn1_var"] + BN_EPS)
    x = x * params["bn1_gamma"] + params["bn1_beta"]
    x = jnp.maximum(x @ params["w2"] + params["b2"], 0.0)
    return x


if __name__ == "__main__":
    key = jax.random.PRNGKey(0)
    k_par, k_cat0, k_cat1, k_cont = jax.random.split(key, 4)

    emb_szs = [(10, 4), (7, 3)]     # -> n_emb = 7
    n_cont = 5
    layers = [32, 16]               # out_sz head dropped by layers[:-2]
    B = 1024                        # 2 grid steps at block_b=512; raise B to benchmark
    block_b = 512

    params = make_params(k_par, emb_szs, n_cont, layers)

    x_cat = jnp.stack(
        [jax.random.randint(k_cat0, (B,), 0, emb_szs[0][0]),
         jax.random.randint(k_cat1, (B,), 0, emb_szs[1][0])], axis=1
    ).astype(jnp.int32)                                           # (B, 2)
    x_cont = jax.random.normal(k_cont, (B, n_cont), jnp.float32)  # (B, 5)

    # Feature-major views at the model boundary (no per-call transpose passes).
    x_cat_fm = jnp.asarray(x_cat.T)                               # (2, B)
    x_cont_fm = jnp.asarray(x_cont.T)                             # (5, B)

    out_fm = jax.block_until_ready(
        tabular_forward_fm(x_cat_fm, x_cont_fm, params, block_b=block_b))
    ref = jax.block_until_ready(tabular_forward_ref(x_cat, x_cont, params))

    assert out_fm.shape == (layers[-1], B), out_fm.shape
    max_err = float(jnp.max(jnp.abs(out_fm.T - ref)))
    assert jnp.allclose(out_fm.T, ref, atol=1e-4, rtol=1e-4), max_err

    # Batch-major convenience wrapper preserves the original module's I/O layout.
    out_bm = jax.block_until_ready(tabular_forward(x_cat, x_cont, params, block_b=block_b))
    assert out_bm.shape == (B, layers[-1]), out_bm.shape
    assert jnp.allclose(out_bm, ref, atol=1e-4, rtol=1e-4)

    print("KERNEL_OK")
</pallas_src>

<mosaic_0001>
module attributes {stable_mosaic.version = 11 : i64} {
  func.func @kernel(%arg0: i32, %arg1: memref<2x512xi32, #tpu.memory_space<vmem>>, %arg2: memref<5x512xf32, #tpu.memory_space<vmem>>, %arg3: memref<32x24xf32, #tpu.memory_space<vmem>>, %arg4: memref<32x1xf32, #tpu.memory_space<vmem>>, %arg5: memref<16x32xf32, #tpu.memory_space<vmem>>, %arg6: memref<16x1xf32, #tpu.memory_space<vmem>>, %arg7: memref<16x512xf32, #tpu.memory_space<vmem>>, %arg8: memref<24x512xf32, #tpu.memory_space<vmem>>) attributes {dimension_semantics = [#tpu.dimension_semantics<parallel>], iteration_bounds = array<i64: 2>, scalar_prefetch = 0 : i64, scratch_operands = 1 : i64, tpu.core_type = #tpu.core_type<tc>, window_params = [{transform_indices = @transform_0, window_bounds = array<i64: 2, 512>}, {transform_indices = @transform_1, window_bounds = array<i64: 5, 512>}, {pipeline_mode = #tpu.pipeline_mode<synchronous>, transform_indices = @transform_2, window_bounds = array<i64: 32, 24>}, {pipeline_mode = #tpu.pipeline_mode<synchronous>, transform_indices = @transform_3, window_bounds = array<i64: 32, 1>}, {pipeline_mode = #tpu.pipeline_mode<synchronous>, transform_indices = @transform_4, window_bounds = array<i64: 16, 32>}, {pipeline_mode = #tpu.pipeline_mode<synchronous>, transform_indices = @transform_5, window_bounds = array<i64: 16, 1>}, {transform_indices = @transform_6, window_bounds = array<i64: 16, 512>}]} {
    %c0 = arith.constant 0 : index
    %c0_0 = arith.constant 0 : index
    %0 = vector.load %arg1[%c0, %c0_0] : memref<2x512xi32, #tpu.memory_space<vmem>>, vector<2x512xi32>
    %1 = tpu.iota {dimensions = array<i32: 0>} : vector<24x512xi32>
    %2 = vector.extract_strided_slice %0 {offsets = [0, 0], sizes = [1, 512], strides = [1, 1]} : vector<2x512xi32> to vector<1x512xi32>
    %c5_i32 = arith.constant 5 : i32
    %3 = vector.broadcast %c5_i32 : i32 to vector<1x512xi32>
    %4 = arith.addi %2, %3 : vector<1x512xi32>
    %5 = vector.broadcast %4 : vector<1x512xi32> to vector<24x512xi32>
    %6 = arith.cmpi eq, %1, %5 : vector<24x512xi32>
    %7 = vector.extract_strided_slice %0 {offsets = [1, 0], sizes = [1, 512], strides = [1, 1]} : vector<2x512xi32> to vector<1x512xi32>
    %c15_i32 = arith.constant 15 : i32
    %8 = vector.broadcast %c15_i32 : i32 to vector<1x512xi32>
    %9 = arith.addi %7, %8 : vector<1x512xi32>
    %10 = vector.broadcast %9 : vector<1x512xi32> to vector<24x512xi32>
    %11 = arith.cmpi eq, %1, %10 : vector<24x512xi32>
    %12 = arith.ori %6, %11 : vector<24x512xi1>
    %13 = arith.extui %12 : vector<24x512xi1> to vector<24x512xi32>
    %14 = arith.sitofp %13 : vector<24x512xi32> to vector<24x512xf32>
    %c0_1 = arith.constant 0 : index
    %c0_2 = arith.constant 0 : index
    %15 = vector.load %arg8[%c0_1, %c0_2] : memref<24x512xf32, #tpu.memory_space<vmem>>, vector<24x512xf32>
    tpu.vector_store %arg8[%c0_1, %c0_2], %14 {strides = array<i32>} : memref<24x512xf32, #tpu.memory_space<vmem>>, vector<24x512xf32>,
    %c0_3 = arith.constant 0 : index
    %c0_4 = arith.constant 0 : index
    %16 = vector.load %arg2[%c0_3, %c0_4] : memref<5x512xf32, #tpu.memory_space<vmem>>, vector<5x512xf32>
    %c0_5 = arith.constant 0 : index
    %c0_6 = arith.constant 0 : index
    %17 = vector.load %arg8[%c0_5, %c0_6] : memref<24x512xf32, #tpu.memory_space<vmem>>, vector<5x512xf32>
    tpu.vector_store %arg8[%c0_5, %c0_6], %16 {strides = array<i32>} : memref<24x512xf32, #tpu.memory_space<vmem>>, vector<5x512xf32>,
    %c0_7 = arith.constant 0 : index
    %c0_8 = arith.constant 0 : index
    %18 = vector.load %arg3[%c0_7, %c0_8] : memref<32x24xf32, #tpu.memory_space<vmem>>, vector<32x24xf32>
    %c0_9 = arith.constant 0 : index
    %c0_10 = arith.constant 0 : index
    %19 = vector.load %arg8[%c0_9, %c0_10] : memref<24x512xf32, #tpu.memory_space<vmem>>, vector<24x512xf32>
    %cst = arith.constant dense<0.000000e+00> : vector<32x512xf32>
    %20 = tpu.matmul %18, %19, %cst {dimension_numbers = #tpu.dot_dimension_numbers<[1], [0], [0], [1], [0, 0, 1, 1], [], []>} : vector<32x24xf32>, vector<24x512xf32>, vector<32x512xf32> -> vector<32x512xf32>
    %c0_11 = arith.constant 0 : index
    %c0_12 = arith.constant 0 : index
    %21 = vector.load %arg4[%c0_11, %c0_12] : memref<32x1xf32, #tpu.memory_space<vmem>>, vector<32x1xf32>
    %22 = vector.broadcast %21 : vector<32x1xf32> to vector<32x512xf32>
    %23 = arith.addf %20, %22 : vector<32x512xf32>
    %cst_13 = arith.constant 0.000000e+00 : f32
    %24 = vector.broadcast %cst_13 : f32 to vector<32x512xf32>
    %25 = arith.maximumf %23, %24 : vector<32x512xf32>
    %c0_14 = arith.constant 0 : index
    %c0_15 = arith.constant 0 : index
    %26 = vector.load %arg5[%c0_14, %c0_15] : memref<16x32xf32, #tpu.memory_space<vmem>>, vector<16x32xf32>
    %cst_16 = arith.constant dense<0.000000e+00> : vector<16x512xf32>
    %27 = tpu.matmul %26, %25, %cst_16 {dimension_numbers = #tpu.dot_dimension_numbers<[1], [0], [0], [1], [0, 0, 1, 1], [], []>} : vector<16x32xf32>, vector<32x512xf32>, vector<16x512xf32> -> vector<16x512xf32>
    %c0_17 = arith.constant 0 : index
    %c0_18 = arith.constant 0 : index
    %28 = vector.load %arg6[%c0_17, %c0_18] : memref<16x1xf32, #tpu.memory_space<vmem>>, vector<16x1xf32>
    %29 = vector.broadcast %28 : vector<16x1xf32> to vector<16x512xf32>
    %30 = arith.addf %27, %29 : vector<16x512xf32>
    %cst_19 = arith.constant 0.000000e+00 : f32
    %31 = vector.broadcast %cst_19 : f32 to vector<16x512xf32>
    %32 = arith.maximumf %30, %31 : vector<16x512xf32>
    %c0_20 = arith.constant 0 : index
    %c0_21 = arith.constant 0 : index
    %33 = vector.load %arg7[%c0_20, %c0_21] : memref<16x512xf32, #tpu.memory_space<vmem>>, vector<16x512xf32>
    tpu.vector_store %arg7[%c0_20, %c0_21], %32 {strides = array<i32>} : memref<16x512xf32, #tpu.memory_space<vmem>>, vector<16x512xf32>,
    return
  }
  func.func @transform_0(%arg0: i32) -> (i32, i32) {
    %c0_i32 = arith.constant 0 : i32
    %c0_i32_0 = arith.constant 0 : i32
    return %c0_i32, %arg0 : i32, i32
  }
  func.func @transform_1(%arg0: i32) -> (i32, i32) {
    %c0_i32 = arith.constant 0 : i32
    %c0_i32_0 = arith.constant 0 : i32
    return %c0_i32, %arg0 : i32, i32
  }
  func.func @transform_2(%arg0: i32) -> (i32, i32) {
    %c0_i32 = arith.constant 0 : i32
    %c0_i32_0 = arith.constant 0 : i32
    %c0_i32_1 = arith.constant 0 : i32
    return %c0_i32, %c0_i32_0 : i32, i32
  }
  func.func @transform_3(%arg0: i32) -> (i32, i32) {
    %c0_i32 = arith.constant 0 : i32
    %c0_i32_0 = arith.constant 0 : i32
    %c0_i32_1 = arith.constant 0 : i32
    return %c0_i32, %c0_i32_0 : i32, i32
  }
  func.func @transform_4(%arg0: i32) -> (i32, i32) {
    %c0_i32 = arith.constant 0 : i32
    %c0_i32_0 = arith.constant 0 : i32
    %c0_i32_1 = arith.constant 0 : i32
    return %c0_i32, %c0_i32_0 : i32, i32
  }
  func.func @transform_5(%arg0: i32) -> (i32, i32) {
    %c0_i32 = arith.constant 0 : i32
    %c0_i32_0 = arith.constant 0 : i32
    %c0_i32_1 = arith.constant 0 : i32
    return %c0_i32, %c0_i32_0 : i32, i32
  }
  func.func @transform_6(%arg0: i32) -> (i32, i32) {
    %c0_i32 = arith.constant 0 : i32
    %c0_i32_0 = arith.constant 0 : i32
    return %c0_i32, %arg0 : i32, i32
  }
}

</mosaic_0001>

<llo_original>
// kernel: tpu_custom_call.1
$region0: #{tpu_custom_call.1}
  #allocation0 [shape = 'u32[]', space=smem, size = 0x4, offset = 0x4, fixed_abs, tag = 'smem constant byte address 0x4 - core index']
  #allocation1 [shape = 'u32[144,128]{1,0:T(1,128)}', space=vmem, size = 0x12000, scoped, tag = 'internal scratch']
  #allocation2 [shape = 'f32[24,512]{1,0:T(8,128)}', space=vmem, size = 0xc000, scoped, tag = 'scratch operand']
  %s0 = inlined_call_operand.vmem [shape: s32[2,1024], index: 0, kind: input, shape index: {}]
  %s1 = inlined_call_operand.vmem [shape: f32[5,1024], index: 1, kind: input, shape index: {}]
  %s2 = inlined_call_operand.vmem [shape: f32[32,24], index: 2, kind: input, shape index: {}]
  %s3 = inlined_call_operand.vmem [shape: f32[32,1], index: 3, kind: input, shape index: {}]
  %s4 = inlined_call_operand.vmem [shape: f32[16,32], index: 4, kind: input, shape index: {}]
  %s5 = inlined_call_operand.vmem [shape: f32[16,1], index: 5, kind: input, shape index: {}]
  %s6 = inlined_call_operand.hbm [shape: f32[16,1024], index: 6, kind: output, shape index: {}]
  %s7 = sld [smem:[#allocation0]]
  $region57: #{tpu_custom_call.1} parent=0
    _
  %s9 = ssub.s32 1, %s7
  %s10 = scalar_select 0, %s9, %s7
  $region1: #{tpu_custom_call.1} parent=0
    #allocation3 [shape = 'u8[65536]{0}', space=vmem, size = 0x10000, scoped, tag = 'output window, operand 0']
    #allocation4 [shape = 's32[2]{0}', space=sflag, size = 0x8, scoped, tag = 'scoped memory for tpu_custom_call.1']
    %11 = vsyncpa [#allocation4], 0
    %s12 = scalar_lea.sflag [#allocation4], 1
    %13 = vsyncpa %s12, 0
    loop: start=0, step=1, limit=4
    $region2: #{tpu_custom_call.1} parent=1 // loop_pre_header
      _
    $region3: #{tpu_custom_call.1} parent=1 // loop_header
      %s15 = sphi 0, %s19
      %p16 = scmp.ge.s32.totalorder %s15, 4
      %s25 = sphi 0, %s27
      %s28 = sphi 0, %s25
      %s29 = sphi 0, %s28
      %s45 = sphi 0, %s29
      %s51 = sphi 0, %s53
      %s54 = sphi 0, %s51
      %s55 = sphi 0, %s54
      %s71 = sphi 0, %s55
      %s75 = sphi 0, %s75
      %s77 = sphi 0, %s75
      %s78 = sphi 0, %s77
      %s92 = sphi 0, %s78
      %s96 = sphi 0, %s96
      %s98 = sphi 0, %s96
      %s99 = sphi 0, %s98
      %s113 = sphi 0, %s99
      %s117 = sphi 0, %s117
      %s119 = sphi 0, %s117
      %s120 = sphi 0, %s119
      %s134 = sphi 0, %s120
      %s138 = sphi 0, %s138
      %s140 = sphi 0, %s138
      %s141 = sphi 0, %s140
      %s155 = sphi 0, %s141
      %s161 = sphi 0, %s163
      %s164 = sphi 0, %s161
      %s165 = sphi 0, %s164
      %s181 = sphi 0, %s165
    $region4: #{tpu_custom_call.1} parent=1 // loop_header_branch
      %18 = sbr.rel (%p16) target = $region8
    $region5: #{tpu_custom_call.1} parent=1 // loop_body
      %s20 = ssub.s32 %s15, 1
      %s21 = ssub.s32 %s15, 2
      %s22 = sadd.s32 %s15, 1
      %s23 = ssub.s32 %s15, %s22
      %p24 = scmp.eq.s32.totalorder %s23, 0
      %s26 = sadd.s32 %s25, 1
      %s27 = scalar_select %p24, %s25, %s26
      %p30 = pneg %p24
      %p31 = scmp.eq.s32.totalorder %s15, 1
      %p32 = por %p30, %p31
      %p33 = scmp.ne.s32.totalorder %s25, %s28
      %p34 = scmp.eq.s32.totalorder %s15, 0
      %p35 = por %p33, %p34
      %p36 = scmp.ne.s32.totalorder %s25, %s28
      %p37 = scmp.eq.s32.totalorder %s20, 1
      %p38 = por %p36, %p37
      %p39 = scmp.ne.s32.totalorder %s28, %s29
      %p40 = scmp.eq.s32.totalorder %s20, 0
      %p41 = por %p39, %p40
      %p42 = scmp.ne.s32.totalorder %s28, %s29
      %p43 = scmp.eq.s32.totalorder %s21, 1
      %p44 = por %p42, %p43
      %p46 = scmp.ne.s32.totalorder %s29, %s45
      %p47 = scmp.eq.s32.totalorder %s21, 0
      %p48 = por %p46, %p47
      %s49 = ssub.s32 %s15, %s22
      %p50 = scmp.eq.s32.totalorder %s49, 0
      %s52 = sadd.s32 %s51, 1
      %s53 = scalar_select %p50, %s51, %s52
      %p56 = pneg %p50
      %p57 = scmp.eq.s32.totalorder %s15, 1
      %p58 = por %p56, %p57
      %p59 = scmp.ne.s32.totalorder %s51, %s54
      %p60 = scmp.eq.s32.totalorder %s15, 0
      %p61 = por %p59, %p60
      %p62 = scmp.ne.s32.totalorder %s51, %s54
      %p63 = scmp.eq.s32.totalorder %s20, 1
      %p64 = por %p62, %p63
      %p65 = scmp.ne.s32.totalorder %s54, %s55
      %p66 = scmp.eq.s32.totalorder %s20, 0
      %p67 = por %p65, %p66
      %p68 = scmp.ne.s32.totalorder %s54, %s55
      %p69 = scmp.eq.s32.totalorder %s21, 1
      %p70 = por %p68, %p69
      %p72 = scmp.ne.s32.totalorder %s55, %s71
      %p73 = scmp.eq.s32.totalorder %s21, 0
      %p74 = por %p72, %p73
      %s76 = sadd.s32 %s75, 1
      %p79 = scmp.eq.s32.totalorder %s15, 1
      %p80 = scmp.ne.s32.totalorder %s75, %s77
      %p81 = scmp.eq.s32.totalorder %s15, 0
      %p82 = por %p80, %p81
      %p83 = scmp.ne.s32.totalorder %s75, %s77
      %p84 = scmp.eq.s32.totalorder %s20, 1
      %p85 = por %p83, %p84
      %p86 = scmp.ne.s32.totalorder %s77, %s78
      %p87 = scmp.eq.s32.totalorder %s20, 0
      %p88 = por %p86, %p87
      %p89 = scmp.ne.s32.totalorder %s77, %s78
      %p90 = scmp.eq.s32.totalorder %s21, 1
      %p91 = por %p89, %p90
      %p93 = scmp.ne.s32.totalorder %s78, %s92
      %p94 = scmp.eq.s32.totalorder %s21, 0
      %p95 = por %p93, %p94
      %s97 = sadd.s32 %s96, 1
      %p100 = scmp.eq.s32.totalorder %s15, 1
      %p101 = scmp.ne.s32.totalorder %s96, %s98
      %p102 = scmp.eq.s32.totalorder %s15, 0
      %p103 = por %p101, %p102
      %p104 = scmp.ne.s32.totalorder %s96, %s98
      %p105 = scmp.eq.s32.totalorder %s20, 1
      %p106 = por %p104, %p105
      %p107 = scmp.ne.s32.totalorder %s98, %s99
      %p108 = scmp.eq.s32.totalorder %s20, 0
      %p109 = por %p107, %p108
      %p110 = scmp.ne.s32.totalorder %s98, %s99
      %p111 = scmp.eq.s32.totalorder %s21, 1
      %p112 = por %p110, %p111
      %p114 = scmp.ne.s32.totalorder %s99, %s113
      %p115 = scmp.eq.s32.totalorder %s21, 0
      %p116 = por %p114, %p115
      %s118 = sadd.s32 %s117, 1
      %p121 = scmp.eq.s32.totalorder %s15, 1
      %p122 = scmp.ne.s32.totalorder %s117, %s119
      %p123 = scmp.eq.s32.totalorder %s15, 0
      %p124 = por %p122, %p123
      %p125 = scmp.ne.s32.totalorder %s117, %s119
      %p126 = scmp.eq.s32.totalorder %s20, 1
      %p127 = por %p125, %p126
      %p128 = scmp.ne.s32.totalorder %s119, %s120
      %p129 = scmp.eq.s32.totalorder %s20, 0
      %p130 = por %p128, %p129
      %p131 = scmp.ne.s32.totalorder %s119, %s120
      %p132 = scmp.eq.s32.totalorder %s21, 1
      %p133 = por %p131, %p132
      %p135 = scmp.ne.s32.totalorder %s120, %s134
      %p136 = scmp.eq.s32.totalorder %s21, 0
      %p137 = por %p135, %p136
      %s139 = sadd.s32 %s138, 1
      %p142 = scmp.eq.s32.totalorder %s15, 1
      %p143 = scmp.ne.s32.totalorder %s138, %s140
      %p144 = scmp.eq.s32.totalorder %s15, 0
      %p145 = por %p143, %p144
      %p146 = scmp.ne.s32.totalorder %s138, %s140
      %p147 = scmp.eq.s32.totalorder %s20, 1
      %p148 = por %p146, %p147
      %p149 = scmp.ne.s32.totalorder %s140, %s141
      %p150 = scmp.eq.s32.totalorder %s20, 0
      %p151 = por %p149, %p150
      %p152 = scmp.ne.s32.totalorder %s140, %s141
      %p153 = scmp.eq.s32.totalorder %s21, 1
      %p154 = por %p152, %p153
      %p156 = scmp.ne.s32.totalorder %s141, %s155
      %p157 = scmp.eq.s32.totalorder %s21, 0
      %p158 = por %p156, %p157
      %s159 = ssub.s32 %s15, %s22
      %p160 = scmp.eq.s32.totalorder %s159, 0
      %s162 = sadd.s32 %s161, 1
      %s163 = scalar_select %p160, %s161, %s162
      %p166 = pneg %p160
      %p167 = scmp.eq.s32.totalorder %s15, 1
      %p168 = por %p166, %p167
      %p169 = scmp.ne.s32.totalorder %s161, %s164
      %p170 = scmp.eq.s32.totalorder %s15, 0
      %p171 = por %p169, %p170
      %p172 = scmp.ne.s32.totalorder %s161, %s164
      %p173 = scmp.eq.s32.totalorder %s20, 1
      %p174 = por %p172, %p173
      %p175 = scmp.ne.s32.totalorder %s164, %s165
      %p176 = scmp.eq.s32.totalorder %s20, 0
      %p177 = por %p175, %p176
      %p178 = scmp.ne.s32.totalorder %s164, %s165
      %p179 = scmp.eq.s32.totalorder %s21, 1
      %p180 = por %p178, %p179
      %p182 = scmp.ne.s32.totalorder %s165, %s181
      %p183 = scmp.eq.s32.totalorder %s21, 0
      %p184 = por %p182, %p183
      %p185 = scmp.le.s32.totalorder 1, %s15
      %p186 = scmp.lt.s32.totalorder %s15, 3
      %p187 = pnand %p185, %p186
      %p188 = pneg %p187
      // Predicated region
      $region9: #{tpu_custom_call.1} parent=5 // pred_check
        _
      $region10: #{tpu_custom_call.1} parent=5 // pred_check_branch
        %190 = sbr.rel (%p187) target = $region12
      $region11: #{tpu_custom_call.1} parent=5 // pred_region
        %s191 = ssub.s32 %s15, 1
        // Predicated region
        $region13: #{tpu_custom_call.1} parent=11 // pred_check
          %p192 = pneg %p88
        $region14: #{tpu_custom_call.1} parent=11 // pred_check_branch
          %194 = sbr.rel (%p192) target = $region16
        $region15: #{tpu_custom_call.1} parent=11 // pred_region
          _
        $region16: #{tpu_custom_call.1} parent=11 // pred_fallthru
          _
        // Predicated region
        $region17: #{tpu_custom_call.1} parent=11 // pred_check
          %p195 = pneg %p109
        $region18: #{tpu_custom_call.1} parent=11 // pred_check_branch
          %197 = sbr.rel (%p195) target = $region20
        $region19: #{tpu_custom_call.1} parent=11 // pred_region
          _
        $region20: #{tpu_custom_call.1} parent=11 // pred_fallthru
          _
        // Predicated region
        $region21: #{tpu_custom_call.1} parent=11 // pred_check
          %p198 = pneg %p130
        $region22: #{tpu_custom_call.1} parent=11 // pred_check_branch
          %200 = sbr.rel (%p198) target = $region24
        $region23: #{tpu_custom_call.1} parent=11 // pred_region
          _
        $region24: #{tpu_custom_call.1} parent=11 // pred_fallthru
          _
        // Predicated region
        $region25: #{tpu_custom_call.1} parent=11 // pred_check
          %p201 = pneg %p151
        $region26: #{tpu_custom_call.1} parent=11 // pred_check_branch
          %203 = sbr.rel (%p201) target = $region28
        $region27: #{tpu_custom_call.1} parent=11 // pred_region
          _
        $region28: #{tpu_custom_call.1} parent=11 // pred_fallthru
          _
      $region12: #{tpu_custom_call.1} parent=5 // pred_fallthru
        _
      %p204 = scmp.lt.s32.totalorder %s15, 2
      // Predicated region
      $region29: #{tpu_custom_call.1} parent=5 // pred_check
        %p205 = pneg %p204
      $region30: #{tpu_custom_call.1} parent=5 // pred_check_branch
        %207 = sbr.rel (%p205) target = $region32
      $region31: #{tpu_custom_call.1} parent=5 // pred_region
        // Predicated region
        $region33: #{tpu_custom_call.1} parent=31 // pred_check
          %p208 = pneg %p35
        $region34: #{tpu_custom_call.1} parent=31 // pred_check_branch
          %210 = sbr.rel (%p208) target = $region36
        $region35: #{tpu_custom_call.1} parent=31 // pred_region
          %s211 = smul.u32 4, %s15
          %p212 = scmp.lt.s32.totalorder %s211, 7
          %s213 = scalar_select %p212, %s211, 7
          %s214 = smul.addr %s213, 2
          %s215 = scalar_lea.vmem %s0, %s214
          %s216 = smul.u32 4, %s15
        $region36: #{tpu_custom_call.1} parent=31 // pred_fallthru
          _
        // Predicated region
        $region37: #{tpu_custom_call.1} parent=31 // pred_check
          %p217 = pneg %p61
        $region38: #{tpu_custom_call.1} parent=31 // pred_check_branch
          %219 = sbr.rel (%p217) target = $region40
        $region39: #{tpu_custom_call.1} parent=31 // pred_region
          %s220 = smul.u32 4, %s15
          %p221 = scmp.lt.s32.totalorder %s220, 7
          %s222 = scalar_select %p221, %s220, 7
          %s223 = smul.addr %s222, 8
          %s224 = scalar_lea.vmem %s1, %s223
          %s225 = smul.u32 4, %s15
        $region40: #{tpu_custom_call.1} parent=31 // pred_fallthru
          _
      $region32: #{tpu_custom_call.1} parent=5 // pred_fallthru
        _
      %p226 = scmp.le.s32.totalorder 1, %s15
      %p227 = scmp.lt.s32.totalorder %s15, 3
      %p228 = pnand %p226, %p227
      %p229 = pneg %p228
      // Predicated region
      $region41: #{tpu_custom_call.1} parent=5 // pred_check
        _
      $region42: #{tpu_custom_call.1} parent=5 // pred_check_branch
        %231 = sbr.rel (%p228) target = $region44
      $region43: #{tpu_custom_call.1} parent=5 // pred_region
        %s232 = ssub.s32 %s15, 1
        %s233 = smul.u32 4, %s20
        %p234 = scmp.lt.s32.totalorder %s233, 7
        %s235 = scalar_select %p234, %s233, 7
        %s236 = smul.addr %s235, 2
        %s237 = scalar_lea.vmem %s0, %s236
        %p238 = pneg %p41
        %p239 = pneg %p38
        %s240 = smul.u32 4, %s20
        %p241 = scmp.lt.s32.totalorder %s240, 7
        %s242 = scalar_select %p241, %s240, 7
        %s243 = smul.addr %s242, 8
        %s244 = scalar_lea.vmem %s1, %s243
        %p245 = pneg %p67
        %p246 = pneg %p64
        %p247 = pneg %p88
        %p248 = pneg %p85
        %p249 = pneg %p109
        %p250 = pneg %p106
        %p251 = pneg %p130
        %p252 = pneg %p127
        %p253 = pneg %p151
        %p254 = pneg %p148
        %p255 = pneg %p177
        %p256 = pneg %p174
        %s257 = sand.u32 %s164, 1
        %s258 = scalar_lea.sflag [#allocation4], %s257
        %s259 = sand.u32 %s164, 1
        %s260 = smul.addr %s259, 64
        %s261 = scalar_lea.vmem [#allocation3], %s260
        %s262 = smul.u32 4, %s20
        %p263 = scmp.lt.s32.totalorder %s262, 7
        %s264 = scalar_select %p263, %s262, 7
        %s265 = smul.addr %s264, 2
        %s266 = scalar_lea.vmem %s0, %s265
        %s267 = smul.u32 4, %s20
        %s268 = smul.u32 4, %s20
        %p269 = scmp.lt.s32.totalorder %s268, 7
        %s270 = scalar_select %p269, %s268, 7
        %s271 = smul.addr %s270, 8
        %s272 = scalar_lea.vmem %s1, %s271
        %s273 = smul.u32 4, %s20
        %s274 = smul.u32 4, %s20
        %v275 = vld [vmem:[%s266] sm:$0xff]
        %v276 = vlaneseq
        %v277 = vshrl.u32 %v276, 7
        %v278 = vadd.s32 %v277, 8
        %v279 = vadd.s32 %v277, 16
        %v280 = vadd.s32 %v275, 5
        %v281 = vlaneseq
        %v282 = vshrl.u32 %v281, 7
        %v283 = vsub.s32 0, %v282
        %v284 = vrot.slane %v280, %v283
        %v285 = vlaneseq
        %v286 = vshrl.u32 %v285, 7
        %v287 = vsub.s32 2, %v286
        %v288 = vrot.slane %v280, %v287
        %v289 = vlaneseq
        %v290 = vshrl.u32 %v289, 7
        %v291 = vsub.s32 4, %v290
        %v292 = vrot.slane %v280, %v291
        %v293 = vlaneseq
        %v294 = vshrl.u32 %v293, 7
        %v295 = vsub.s32 6, %v294
        %v296 = vrot.slane %v280, %v295
        %v297 = vlaneseq
        %v298 = vshrl.u32 %v297, 7
        %v299 = vsub.s32 0, %v298
        %v300 = vrot.slane %v284, %v299
        %v301 = vlaneseq
        %v302 = vshrl.u32 %v301, 7
        %v303 = vsub.s32 0, %v302
        %v304 = vrot.slane %v288, %v303
        %v305 = vlaneseq
        %v306 = vshrl.u32 %v305, 7
        %v307 = vsub.s32 0, %v306
        %v308 = vrot.slane %v292, %v307
        %v309 = vlaneseq
        %v310 = vshrl.u32 %v309, 7
        %v311 = vsub.s32 0, %v310
        %v312 = vrot.slane %v296, %v311
        %vm313 = vcmp.eq.s32.totalorder %v277, %v300
        %vm314 = vcmp.eq.s32.totalorder %v277, %v304
        %vm315 = vcmp.eq.s32.totalorder %v277, %v308
        %vm316 = vcmp.eq.s32.totalorder %v277, %v312
        %vm317 = vcmp.eq.s32.totalorder %v278, %v300
        %vm318 = vcmp.eq.s32.totalorder %v278, %v304
        %vm319 = vcmp.eq.s32.totalorder %v278, %v308
        %vm320 = vcmp.eq.s32.totalorder %v278, %v312
        %vm321 = vcmp.eq.s32.totalorder %v279, %v300
        %vm322 = vcmp.eq.s32.totalorder %v279, %v304
        %vm323 = vcmp.eq.s32.totalorder %v279, %v308
        %vm324 = vcmp.eq.s32.totalorder %v279, %v312
        %v325 = vadd.s32 %v275, 15
        %v326 = vlaneseq
        %v327 = vshrl.u32 %v326, 7
        %v328 = vsub.s32 1, %v327
        %v329 = vrot.slane %v325, %v328
        %v330 = vlaneseq
        %v331 = vshrl.u32 %v330, 7
        %v332 = vsub.s32 3, %v331
        %v333 = vrot.slane %v325, %v332
        %v334 = vlaneseq
        %v335 = vshrl.u32 %v334, 7
        %v336 = vsub.s32 5, %v335
        %v337 = vrot.slane %v325, %v336
        %v338 = vlaneseq
        %v339 = vshrl.u32 %v338, 7
        %v340 = vsub.s32 7, %v339
        %v341 = vrot.slane %v325, %v340
        %v342 = vlaneseq
        %v343 = vshrl.u32 %v342, 7
        %v344 = vsub.s32 1, %v343
        %v345 = vrot.slane %v329, %v344
        %v346 = vlaneseq
        %v347 = vshrl.u32 %v346, 7
        %v348 = vsub.s32 1, %v347
        %v349 = vrot.slane %v333, %v348
        %v350 = vlaneseq
        %v351 = vshrl.u32 %v350, 7
        %v352 = vsub.s32 1, %v351
        %v353 = vrot.slane %v337, %v352
        %v354 = vlaneseq
        %v355 = vshrl.u32 %v354, 7
        %v356 = vsub.s32 1, %v355
        %v357 = vrot.slane %v341, %v356
        %vm358 = vcmp.eq.s32.totalorder %v277, %v345
        %vm359 = vcmp.eq.s32.totalorder %v277, %v349
        %vm360 = vcmp.eq.s32.totalorder %v277, %v353
        %vm361 = vcmp.eq.s32.totalorder %v277, %v357
        %vm362 = vcmp.eq.s32.totalorder %v278, %v345
        %vm363 = vcmp.eq.s32.totalorder %v278, %v349
        %vm364 = vcmp.eq.s32.totalorder %v278, %v353
        %vm365 = vcmp.eq.s32.totalorder %v278, %v357
        %vm366 = vcmp.eq.s32.totalorder %v279, %v345
        %vm367 = vcmp.eq.s32.totalorder %v279, %v349
        %vm368 = vcmp.eq.s32.totalorder %v279, %v353
        %vm369 = vcmp.eq.s32.totalorder %v279, %v357
        %vm370 = vmor %vm313, %vm358
        %vm371 = vmor %vm314, %vm359
        %vm372 = vmor %vm315, %vm360
        %vm373 = vmor %vm316, %vm361
        %vm374 = vmor %vm317, %vm362
        %vm375 = vmor %vm318, %vm363
        %vm376 = vmor %vm319, %vm364
        %vm377 = vmor %vm320, %vm365
        %vm378 = vmor %vm321, %vm366
        %vm379 = vmor %vm322, %vm367
        %vm380 = vmor %vm323, %vm368
        %vm381 = vmor %vm324, %vm369
        %v382 = vsel %vm370, 1, 0
        %v383 = vsel %vm371, 1, 0
        %v384 = vsel %vm372, 1, 0
        %v385 = vsel %vm373, 1, 0
        %v386 = vsel %vm374, 1, 0
        %v387 = vsel %vm375, 1, 0
        %v388 = vsel %vm376, 1, 0
        %v389 = vsel %vm377, 1, 0
        %v390 = vsel %vm378, 1, 0
        %v391 = vsel %vm379, 1, 0
        %v392 = vsel %vm380, 1, 0
        %v393 = vsel %vm381, 1, 0
        %v394 = vcvt.s32.f32 %v382
        %v395 = vcvt.s32.f32 %v383
        %v396 = vcvt.s32.f32 %v384
        %v397 = vcvt.s32.f32 %v385
        %v398 = vcvt.s32.f32 %v386
        %v399 = vcvt.s32.f32 %v387
        %v400 = vcvt.s32.f32 %v388
        %v401 = vcvt.s32.f32 %v389
        %v402 = vcvt.s32.f32 %v390
        %v403 = vcvt.s32.f32 %v391
        %v404 = vcvt.s32.f32 %v392
        %v405 = vcvt.s32.f32 %v393
        %406 = vst [vmem:[#allocation2] sm:$0xff] %v394
        %407 = vst [vmem:[#allocation2 + $0x8] sm:$0xff] %v395
        %408 = vst [vmem:[#allocation2 + $0x10] sm:$0xff] %v396
        %409 = vst [vmem:[#allocation2 + $0x18] sm:$0xff] %v397
        %410 = vst [vmem:[#allocation2 + $0x20] sm:$0xff] %v398
        %411 = vst [vmem:[#allocation2 + $0x28] sm:$0xff] %v399
        %412 = vst [vmem:[#allocation2 + $0x30] sm:$0xff] %v400
        %413 = vst [vmem:[#allocation2 + $0x38] sm:$0xff] %v401
        %414 = vst [vmem:[#allocation2 + $0x40] sm:$0xff] %v402
        %415 = vst [vmem:[#allocation2 + $0x48] sm:$0xff] %v403
        %416 = vst [vmem:[#allocation2 + $0x50] sm:$0xff] %v404
        %417 = vst [vmem:[#allocation2 + $0x58] sm:$0xff] %v405
        %v418 = vld [vmem:[%s272] sm:$0x1f]
        %v419 = vld [vmem:[%s272 + $0x8] sm:$0x1f]
        %v420 = vld [vmem:[%s272 + $0x10] sm:$0x1f]
        %v421 = vld [vmem:[%s272 + $0x18] sm:$0x1f]
        %422 = vst [vmem:[#allocation2] sm:$0x1f] %v418
        %423 = vst [vmem:[#allocation2 + $0x8] sm:$0x1f] %v419
        %424 = vst [vmem:[#allocation2 + $0x10] sm:$0x1f] %v420
        %425 = vst [vmem:[#allocation2 + $0x18] sm:$0x1f] %v421
        %v426 = vld [vmem:[%s2] sm:$0xff]
        %v427 = vld [vmem:[%s2 + $0x8] sm:$0xff]
        %v428 = vld [vmem:[%s2 + $0x10] sm:$0xff]
        %v429 = vld [vmem:[%s2 + $0x18] sm:$0xff]
        %v430 = vld [vmem:[#allocation2] sm:$0xff]
        %v431 = vld [vmem:[#allocation2 + $0x8] sm:$0xff]
        %v432 = vld [vmem:[#allocation2 + $0x10] sm:$0xff]
        %v433 = vld [vmem:[#allocation2 + $0x18] sm:$0xff]
        %v434 = vld [vmem:[#allocation2 + $0x20] sm:$0xff]
        %v435 = vld [vmem:[#allocation2 + $0x28] sm:$0xff]
        %v436 = vld [vmem:[#allocation2 + $0x30] sm:$0xff]
        %v437 = vld [vmem:[#allocation2 + $0x38] sm:$0xff]
        %v438 = vld [vmem:[#allocation2 + $0x40] sm:$0xff]
        %v439 = vld [vmem:[#allocation2 + $0x48] sm:$0xff]
        %v440 = vld [vmem:[#allocation2 + $0x50] sm:$0xff]
        %v441 = vld [vmem:[#allocation2 + $0x58] sm:$0xff]
        %v442 = vld [vmem:[%s3] sm:$0xff]
        %v443 = vld [vmem:[%s3 + $0x8] sm:$0xff]
        %v444 = vld [vmem:[%s3 + $0x10] sm:$0xff]
        %v445 = vld [vmem:[%s3 + $0x18] sm:$0xff]
        %447 = vset.pattern.permute.xlu0 0
        %448 = vperm.xlu0 %447, %v442
        %v449 = vpop.permute.xlu0 %448
        %452 = vset.pattern.permute.xlu0 0
        %453 = vperm.xlu0 %452, %v443
        %v454 = vpop.permute.xlu0 %453
        %457 = vset.pattern.permute.xlu0 0
        %458 = vperm.xlu0 %457, %v444
        %v459 = vpop.permute.xlu0 %458
        %462 = vset.pattern.permute.xlu0 0
        %463 = vperm.xlu0 %462, %v445
        %v464 = vpop.permute.xlu0 %463
        %vm466 = vcmask 195584
        %v468 = vsel %vm466, %v426, 0
        %v471 = vsel %vm466, %v427, 0
        %v474 = vsel %vm466, %v428, 0
        %v477 = vsel %vm466, %v429, 0
        %479 = vmatprep.subr.mxu0 0.0
        %480 = vmatpush1.msra.mxu0 0.0
        %481 = vmatprep.subr.mxu0 0.0
        %482 = vmatpush1.msra.mxu0 0.0
        %483 = vmatprep.subr.mxu0 0.0
        %484 = vmatpush1.msra.mxu0 0.0
        %485 = vmatprep.subr.mxu0 0.0
        %486 = vmatpush1.msra.mxu0 0.0
        %487 = vmatprep.subr.mxu0 0.0
        %488 = vmatpush1.msra.mxu0 0.0
        %489 = vmatprep.subr.mxu0 0.0
        %490 = vmatpush1.msra.mxu0 0.0
        %491 = vmatprep.subr.mxu0 0.0
        %492 = vmatpush1.msra.mxu0 0.0
        %493 = vmatprep.subr.mxu0 0.0
        %494 = vmatpush1.msra.mxu0 0.0
        %495 = vmatprep.subr.mxu0 0.0
        %496 = vmatpush1.msra.mxu0 0.0
        %497 = vmatprep.subr.mxu0 0.0
        %498 = vmatpush1.msra.mxu0 0.0
        %499 = vmatprep.subr.mxu0 0.0
        %500 = vmatpush1.msra.mxu0 0.0
        %501 = vmatprep.subr.mxu0 0.0
        %502 = vmatpush1.msra.mxu0 0.0
        %503 = vmatprep.subr.mxu0 0.0
        %504 = vmatpush1.msra.mxu0 0.0
        %505 = vmatprep.subr.mxu0 %v439
        %506 = vmatpush1.msra.mxu0 %v438
        %507 = vmatprep.subr.mxu0 %v435
        %508 = vmatpush1.msra.mxu0 %v434
        %509 = vmatprep.subr.mxu0 %v431
        %510 = vmatpush1.msra.mxu0 %v430
        %511 = vmatprep.subr.mxu0 0.0
        %512 = vmatpush2.msra.mxu0 0.0
        %513 = vmatprep.subr.mxu0 0.0
        %514 = vmatpush2.msra.mxu0 0.0
        %515 = vmatprep.subr.mxu0 0.0
        %516 = vmatpush2.msra.mxu0 0.0
        %517 = vmatprep.subr.mxu0 0.0
        %518 = vmatpush2.msra.mxu0 0.0
        %519 = vmatprep.subr.mxu0 0.0
        %520 = vmatpush2.msra.mxu0 0.0
        %521 = vmatprep.subr.mxu0 0.0
        %522 = vmatpush2.msra.mxu0 0.0
        %523 = vmatprep.subr.mxu0 0.0
        %524 = vmatpush2.msra.mxu0 0.0
        %525 = vmatprep.subr.mxu0 0.0
        %526 = vmatpush2.msra.mxu0 0.0
        %527 = vmatprep.subr.mxu0 0.0
        %528 = vmatpush2.msra.mxu0 0.0
        %529 = vmatprep.subr.mxu0 0.0
        %530 = vmatpush2.msra.mxu0 0.0
        %531 = vmatprep.subr.mxu0 0.0
        %532 = vmatpush2.msra.mxu0 0.0
        %533 = vmatprep.subr.mxu0 0.0
        %534 = vmatpush2.msra.mxu0 0.0
        %535 = vmatprep.subr.mxu0 0.0
        %536 = vmatpush2.msra.mxu0 0.0
        %537 = vmatprep.subr.mxu0 0.0
        %538 = vmatpush2.msra.mxu0 0.0
        %539 = vmatprep.subr.mxu0 0.0
        %540 = vmatpush2.msra.mxu0 0.0
        %541 = vmatprep.subr.mxu0 0.0
        %542 = vmatpush2.msra.mxu0 0.0
        %543 = vmatprep.mubr.f32.mxu0 0.0
        %544 = vmatmul.mubr.f32.gmra.mxu0 %v468
        %v545 = vpop.f32.mrf.mxu0
        %v546 = vadd.f32 %v449, %v545
        %v547 = vpop.f32.mrf.mxu0
        %v548 = vadd.f32 %v449, %v547
        %549 = vmatprep.mubr.f32.mxu0 0.0
        %550 = vmatmul.mubr.f32.gmra.mxu0 %v471
        %v551 = vpop.f32.mrf.mxu0
        %v552 = vadd.f32 %v454, %v551
        %v553 = vpop.f32.mrf.mxu0
        %v554 = vadd.f32 %v454, %v553
        %555 = vmatprep.mubr.f32.mxu0 0.0
        %556 = vmatmul.mubr.f32.gmra.mxu0 %v474
        %v557 = vpop.f32.mrf.mxu0
        %v558 = vadd.f32 %v459, %v557
        %v559 = vpop.f32.mrf.mxu0
        %v560 = vadd.f32 %v459, %v559
        %561 = vmatprep.mubr.f32.mxu0 0.0
        %562 = vmatmul.mubr.f32.gmra.mxu0 %v477
        %v563 = vpop.f32.mrf.mxu0
        %v564 = vadd.f32 %v464, %v563
        %v565 = vpop.f32.mrf.mxu0
        %v566 = vadd.f32 %v464, %v565
        %567 = vdwg.mxu0
        %568 = vmatprep.subr.mxu0 0.0
        %569 = vmatpush1.msra.mxu0 0.0
        %570 = vmatprep.subr.mxu0 0.0
        %571 = vmatpush1.msra.mxu0 0.0
        %572 = vmatprep.subr.mxu0 0.0
        %573 = vmatpush1.msra.mxu0 0.0
        %574 = vmatprep.subr.mxu0 0.0
        %575 = vmatpush1.msra.mxu0 0.0
        %576 = vmatprep.subr.mxu0 0.0
        %577 = vmatpush1.msra.mxu0 0.0
        %578 = vmatprep.subr.mxu0 0.0
        %579 = vmatpush1.msra.mxu0 0.0
        %580 = vmatprep.subr.mxu0 0.0
        %581 = vmatpush1.msra.mxu0 0.0
        %582 = vmatprep.subr.mxu0 0.0
        %583 = vmatpush1.msra.mxu0 0.0
        %584 = vmatprep.subr.mxu0 0.0
        %585 = vmatpush1.msra.mxu0 0.0
        %586 = vmatprep.subr.mxu0 0.0
        %587 = vmatpush1.msra.mxu0 0.0
        %588 = vmatprep.subr.mxu0 0.0
        %589 = vmatpush1.msra.mxu0 0.0
        %590 = vmatprep.subr.mxu0 0.0
        %591 = vmatpush1.msra.mxu0 0.0
        %592 = vmatprep.subr.mxu0 0.0
        %593 = vmatpush1.msra.mxu0 0.0
        %594 = vmatprep.subr.mxu0 %v441
        %595 = vmatpush1.msra.mxu0 %v440
        %596 = vmatprep.subr.mxu0 %v437
        %597 = vmatpush1.msra.mxu0 %v436
        %598 = vmatprep.subr.mxu0 %v433
        %599 = vmatpush1.msra.mxu0 %v432
        %600 = vmatprep.subr.mxu0 0.0
        %601 = vmatpush2.msra.mxu0 0.0
        %602 = vmatprep.subr.mxu0 0.0
        %603 = vmatpush2.msra.mxu0 0.0
        %604 = vmatprep.subr.mxu0 0.0
        %605 = vmatpush2.msra.mxu0 0.0
        %606 = vmatprep.subr.mxu0 0.0
        %607 = vmatpush2.msra.mxu0 0.0
        %608 = vmatprep.subr.mxu0 0.0
        %609 = vmatpush2.msra.mxu0 0.0
        %610 = vmatprep.subr.mxu0 0.0
        %611 = vmatpush2.msra.mxu0 0.0
        %612 = vmatprep.subr.mxu0 0.0
        %613 = vmatpush2.msra.mxu0 0.0
        %614 = vmatprep.subr.mxu0 0.0
        %615 = vmatpush2.msra.mxu0 0.0
        %616 = vmatprep.subr.mxu0 0.0
        %617 = vmatpush2.msra.mxu0 0.0
        %618 = vmatprep.subr.mxu0 0.0
        %619 = vmatpush2.msra.mxu0 0.0
        %620 = vmatprep.subr.mxu0 0.0
        %621 = vmatpush2.msra.mxu0 0.0
        %622 = vmatprep.subr.mxu0 0.0
        %623 = vmatpush2.msra.mxu0 0.0
        %624 = vmatprep.subr.mxu0 0.0
        %625 = vmatpush2.msra.mxu0 0.0
        %626 = vmatprep.subr.mxu0 0.0
        %627 = vmatpush2.msra.mxu0 0.0
        %628 = vmatprep.subr.mxu0 0.0
        %629 = vmatpush2.msra.mxu0 0.0
        %630 = vmatprep.subr.mxu0 0.0
        %631 = vmatpush2.msra.mxu0 0.0
        %632 = vmatprep.mubr.f32.mxu0 0.0
        %633 = vmatmul.mubr.f32.gmra.mxu0 %v468
        %v634 = vpop.f32.mrf.mxu0
        %v635 = vadd.f32 %v449, %v634
        %v636 = vpop.f32.mrf.mxu0
        %v637 = vadd.f32 %v449, %v636
        %638 = vmatprep.mubr.f32.mxu0 0.0
        %639 = vmatmul.mubr.f32.gmra.mxu0 %v471
        %v640 = vpop.f32.mrf.mxu0
        %v641 = vadd.f32 %v454, %v640
        %v642 = vpop.f32.mrf.mxu0
        %v643 = vadd.f32 %v454, %v642
        %644 = vmatprep.mubr.f32.mxu0 0.0
        %645 = vmatmul.mubr.f32.gmra.mxu0 %v474
        %v646 = vpop.f32.mrf.mxu0
        %v647 = vadd.f32 %v459, %v646
        %v648 = vpop.f32.mrf.mxu0
        %v649 = vadd.f32 %v459, %v648
        %650 = vmatprep.mubr.f32.mxu0 0.0
        %651 = vmatmul.mubr.f32.gmra.mxu0 %v477
        %v652 = vpop.f32.mrf.mxu0
        %v653 = vadd.f32 %v464, %v652
        %v654 = vpop.f32.mrf.mxu0
        %v655 = vadd.f32 %v464, %v654
        %656 = vdwg.mxu0
        %v657 = vmax.f32 %v546, 0.0
        %v658 = vmax.f32 %v548, 0.0
        %v659 = vmax.f32 %v635, 0.0
        %v660 = vmax.f32 %v637, 0.0
        %v661 = vmax.f32 %v552, 0.0
        %v662 = vmax.f32 %v554, 0.0
        %v663 = vmax.f32 %v641, 0.0
        %v664 = vmax.f32 %v643, 0.0
        %v665 = vmax.f32 %v558, 0.0
        %v666 = vmax.f32 %v560, 0.0
        %v667 = vmax.f32 %v647, 0.0
        %v668 = vmax.f32 %v649, 0.0
        %v669 = vmax.f32 %v564, 0.0
        %v670 = vmax.f32 %v566, 0.0
        %v671 = vmax.f32 %v653, 0.0
        %v672 = vmax.f32 %v655, 0.0
        %v673 = vld [vmem:[%s4] sm:$0xff]
        %v674 = vld [vmem:[%s4 + $0x8] sm:$0xff]
        %v675 = vld [vmem:[%s5] sm:$0xff]
        %v676 = vld [vmem:[%s5 + $0x8] sm:$0xff]
        %678 = vset.pattern.permute.xlu0 0
        %679 = vperm.xlu0 %678, %v675
        %v680 = vpop.permute.xlu0 %679
        %683 = vset.pattern.permute.xlu0 0
        %684 = vperm.xlu0 %683, %v676
        %v685 = vpop.permute.xlu0 %684
        %vm687 = vcmask 261120
        %v689 = vsel %vm687, %v673, 0
        %v692 = vsel %vm687, %v674, 0
        %694 = vmatprep.subr.mxu0 0.0
        %695 = vmatpush1.msra.mxu0 0.0
        %696 = vmatprep.subr.mxu0 0.0
        %697 = vmatpush1.msra.mxu0 0.0
        %698 = vmatprep.subr.mxu0 0.0
        %699 = vmatpush1.msra.mxu0 0.0
        %700 = vmatprep.subr.mxu0 0.0
        %701 = vmatpush1.msra.mxu0 0.0
        %702 = vmatprep.subr.mxu0 0.0
        %703 = vmatpush1.msra.mxu0 0.0
        %704 = vmatprep.subr.mxu0 0.0
        %705 = vmatpush1.msra.mxu0 0.0
        %706 = vmatprep.subr.mxu0 0.0
        %707 = vmatpush1.msra.mxu0 0.0
        %708 = vmatprep.subr.mxu0 0.0
        %709 = vmatpush1.msra.mxu0 0.0
        %710 = vmatprep.subr.mxu0 0.0
        %711 = vmatpush1.msra.mxu0 0.0
        %712 = vmatprep.subr.mxu0 0.0
        %713 = vmatpush1.msra.mxu0 0.0
        %714 = vmatprep.subr.mxu0 0.0
        %715 = vmatpush1.msra.mxu0 0.0
        %716 = vmatprep.subr.mxu0 0.0
        %717 = vmatpush1.msra.mxu0 0.0
        %718 = vmatprep.subr.mxu0 %v670
        %719 = vmatpush1.msra.mxu0 %v669
        %720 = vmatprep.subr.mxu0 %v666
        %721 = vmatpush1.msra.mxu0 %v665
        %722 = vmatprep.subr.mxu0 %v662
        %723 = vmatpush1.msra.mxu0 %v661
        %724 = vmatprep.subr.mxu0 %v658
        %725 = vmatpush1.msra.mxu0 %v657
        %726 = vmatprep.subr.mxu0 0.0
        %727 = vmatpush2.msra.mxu0 0.0
        %728 = vmatprep.subr.mxu0 0.0
        %729 = vmatpush2.msra.mxu0 0.0
        %730 = vmatprep.subr.mxu0 0.0
        %731 = vmatpush2.msra.mxu0 0.0
        %732 = vmatprep.subr.mxu0 0.0
        %733 = vmatpush2.msra.mxu0 0.0
        %734 = vmatprep.subr.mxu0 0.0
        %735 = vmatpush2.msra.mxu0 0.0
        %736 = vmatprep.subr.mxu0 0.0
        %737 = vmatpush2.msra.mxu0 0.0
        %738 = vmatprep.subr.mxu0 0.0
        %739 = vmatpush2.msra.mxu0 0.0
        %740 = vmatprep.subr.mxu0 0.0
        %741 = vmatpush2.msra.mxu0 0.0
        %742 = vmatprep.subr.mxu0 0.0
        %743 = vmatpush2.msra.mxu0 0.0
        %744 = vmatprep.subr.mxu0 0.0
        %745 = vmatpush2.msra.mxu0 0.0
        %746 = vmatprep.subr.mxu0 0.0
        %747 = vmatpush2.msra.mxu0 0.0
        %748 = vmatprep.subr.mxu0 0.0
        %749 = vmatpush2.msra.mxu0 0.0
        %750 = vmatprep.subr.mxu0 0.0
        %751 = vmatpush2.msra.mxu0 0.0
        %752 = vmatprep.subr.mxu0 0.0
        %753 = vmatpush2.msra.mxu0 0.0
        %754 = vmatprep.subr.mxu0 0.0
        %755 = vmatpush2.msra.mxu0 0.0
        %756 = vmatprep.subr.mxu0 0.0
        %757 = vmatpush2.msra.mxu0 0.0
        %758 = vmatprep.mubr.f32.mxu0 0.0
        %759 = vmatmul.mubr.f32.gmra.mxu0 %v689
        %v760 = vpop.f32.mrf.mxu0
        %v761 = vadd.f32 %v680, %v760
        %v762 = vpop.f32.mrf.mxu0
        %v763 = vadd.f32 %v680, %v762
        %764 = vmatprep.mubr.f32.mxu0 0.0
        %765 = vmatmul.mubr.f32.gmra.mxu0 %v692
        %v766 = vpop.f32.mrf.mxu0
        %v767 = vadd.f32 %v685, %v766
        %v768 = vpop.f32.mrf.mxu0
        %v769 = vadd.f32 %v685, %v768
        %770 = vdwg.mxu0
        %771 = vmatprep.subr.mxu0 0.0
        %772 = vmatpush1.msra.mxu0 0.0
        %773 = vmatprep.subr.mxu0 0.0
        %774 = vmatpush1.msra.mxu0 0.0
        %775 = vmatprep.subr.mxu0 0.0
        %776 = vmatpush1.msra.mxu0 0.0
        %777 = vmatprep.subr.mxu0 0.0
        %778 = vmatpush1.msra.mxu0 0.0
        %779 = vmatprep.subr.mxu0 0.0
        %780 = vmatpush1.msra.mxu0 0.0
        %781 = vmatprep.subr.mxu0 0.0
        %782 = vmatpush1.msra.mxu0 0.0
        %783 = vmatprep.subr.mxu0 0.0
        %784 = vmatpush1.msra.mxu0 0.0
        %785 = vmatprep.subr.mxu0 0.0
        %786 = vmatpush1.msra.mxu0 0.0
        %787 = vmatprep.subr.mxu0 0.0
        %788 = vmatpush1.msra.mxu0 0.0
        %789 = vmatprep.subr.mxu0 0.0
        %790 = vmatpush1.msra.mxu0 0.0
        %791 = vmatprep.subr.mxu0 0.0
        %792 = vmatpush1.msra.mxu0 0.0
        %793 = vmatprep.subr.mxu0 0.0
        %794 = vmatpush1.msra.mxu0 0.0
        %795 = vmatprep.subr.mxu0 %v672
        %796 = vmatpush1.msra.mxu0 %v671
        %797 = vmatprep.subr.mxu0 %v668
        %798 = vmatpush1.msra.mxu0 %v667
        %799 = vmatprep.subr.mxu0 %v664
        %800 = vmatpush1.msra.mxu0 %v663
        %801 = vmatprep.subr.mxu0 %v660
        %802 = vmatpush1.msra.mxu0 %v659
        %803 = vmatprep.subr.mxu0 0.0
        %804 = vmatpush2.msra.mxu0 0.0
        %805 = vmatprep.subr.mxu0 0.0
        %806 = vmatpush2.msra.mxu0 0.0
        %807 = vmatprep.subr.mxu0 0.0
        %808 = vmatpush2.msra.mxu0 0.0
        %809 = vmatprep.subr.mxu0 0.0
        %810 = vmatpush2.msra.mxu0 0.0
        %811 = vmatprep.subr.mxu0 0.0
        %812 = vmatpush2.msra.mxu0 0.0
        %813 = vmatprep.subr.mxu0 0.0
        %814 = vmatpush2.msra.mxu0 0.0
        %815 = vmatprep.subr.mxu0 0.0
        %816 = vmatpush2.msra.mxu0 0.0
        %817 = vmatprep.subr.mxu0 0.0
        %818 = vmatpush2.msra.mxu0 0.0
        %819 = vmatprep.subr.mxu0 0.0
        %820 = vmatpush2.msra.mxu0 0.0
        %821 = vmatprep.subr.mxu0 0.0
        %822 = vmatpush2.msra.mxu0 0.0
        %823 = vmatprep.subr.mxu0 0.0
        %824 = vmatpush2.msra.mxu0 0.0
        %825 = vmatprep.subr.mxu0 0.0
        %826 = vmatpush2.msra.mxu0 0.0
        %827 = vmatprep.subr.mxu0 0.0
        %828 = vmatpush2.msra.mxu0 0.0
        %829 = vmatprep.subr.mxu0 0.0
        %830 = vmatpush2.msra.mxu0 0.0
        %831 = vmatprep.subr.mxu0 0.0
        %832 = vmatpush2.msra.mxu0 0.0
        %833 = vmatprep.subr.mxu0 0.0
        %834 = vmatpush2.msra.mxu0 0.0
        %835 = vmatprep.mubr.f32.mxu0 0.0
        %836 = vmatmul.mubr.f32.gmra.mxu0 %v689
        %v837 = vpop.f32.mrf.mxu0
        %v838 = vadd.f32 %v680, %v837
        %v839 = vpop.f32.mrf.mxu0
        %v840 = vadd.f32 %v680, %v839
        %841 = vmatprep.mubr.f32.mxu0 0.0
        %842 = vmatmul.mubr.f32.gmra.mxu0 %v692
        %v843 = vpop.f32.mrf.mxu0
        %v844 = vadd.f32 %v685, %v843
        %v845 = vpop.f32.mrf.mxu0
        %v846 = vadd.f32 %v685, %v845
        %847 = vdwg.mxu0
        %v848 = vmax.f32 %v761, 0.0
        %v849 = vmax.f32 %v763, 0.0
        %v850 = vmax.f32 %v838, 0.0
        %v851 = vmax.f32 %v840, 0.0
        %v852 = vmax.f32 %v767, 0.0
        %v853 = vmax.f32 %v769, 0.0
        %v854 = vmax.f32 %v844, 0.0
        %v855 = vmax.f32 %v846, 0.0
        %856 = vst [vmem:[%s261] sm:$0xff] %v848
        %857 = vst [vmem:[%s261 + $0x8] sm:$0xff] %v849
        %858 = vst [vmem:[%s261 + $0x10] sm:$0xff] %v850
        %859 = vst [vmem:[%s261 + $0x18] sm:$0xff] %v851
        %860 = vst [vmem:[%s261 + $0x20] sm:$0xff] %v852
        %861 = vst [vmem:[%s261 + $0x28] sm:$0xff] %v853
        %862 = vst [vmem:[%s261 + $0x30] sm:$0xff] %v854
        %863 = vst [vmem:[%s261 + $0x38] sm:$0xff] %v855
        %s864 = sand.u32 %s164, 1
        %s865 = scalar_lea.sflag [#allocation4], %s864
        %s866 = sand.u32 %s164, 1
        %s867 = smul.addr %s866, 64
        %s868 = scalar_lea.vmem [#allocation3], %s867
        // Predicated region
        $region45: #{tpu_custom_call.1} parent=43 // pred_check
          %p869 = pneg %p174
        $region46: #{tpu_custom_call.1} parent=43 // pred_check_branch
          %871 = sbr.rel (%p869) target = $region48
        $region47: #{tpu_custom_call.1} parent=43 // pred_region
          %s872 = smul.u32 4, %s20
          %s874 = ssub.s32 1024, 1024
          %875 = vsyncadd %s865, %s874
          %s876 = smul.addr %s872, 128
          %s877 = scalar_lea.hbm %s6, %s876
          %s878 = sshll.u32 %s868, 4
          %s879 = int_to_ptr.vmem [resolvable:$true] %s878
          %884 = dma.vmem_to_hbm [thread:$0]  %s879, 1024, %s877, %s865, 512, 1024, 32
        $region48: #{tpu_custom_call.1} parent=43 // pred_fallthru
          _
      $region44: #{tpu_custom_call.1} parent=5 // pred_fallthru
        _
      %p885 = scmp.le.s32.totalorder 2, %s15
      // Predicated region
      $region49: #{tpu_custom_call.1} parent=5 // pred_check
        %p886 = pneg %p885
      $region50: #{tpu_custom_call.1} parent=5 // pred_check_branch
        %888 = sbr.rel (%p886) target = $region52
      $region51: #{tpu_custom_call.1} parent=5 // pred_region
        %s889 = ssub.s32 %s15, 2
        // Predicated region
        $region53: #{tpu_custom_call.1} parent=51 // pred_check
          %p890 = pneg %p180
        $region54: #{tpu_custom_call.1} parent=51 // pred_check_branch
          %892 = sbr.rel (%p890) target = $region56
        $region55: #{tpu_custom_call.1} parent=51 // pred_region
          %s893 = sand.u32 %s165, 1
          %s894 = scalar_lea.sflag [#allocation4], %s893
          %s895 = sand.u32 %s165, 1
          %s896 = smul.addr %s895, 64
          %s897 = scalar_lea.vmem [#allocation3], %s896
          %898 = dma.done %s894, 1024
        $region56: #{tpu_custom_call.1} parent=51 // pred_fallthru
          _
      $region52: #{tpu_custom_call.1} parent=5 // pred_fallthru
        _
    $region6: #{tpu_custom_call.1} parent=1 // loop_footer
      %s19 = sadd.s32 1, %s15
    $region7: #{tpu_custom_call.1} parent=1 // loop_footer_branch
      %14 = sbr.rel target = $region3
    $region8: #{tpu_custom_call.1} parent=1 // loop_exit
      _
    %899 = vsyncpa [#allocation4], 1
    %s900 = scalar_lea.sflag [#allocation4], 1
    %901 = vsyncpa %s900, 1

</llo_original>
